<compile_context>
chip_gen: v6e
topology: v6e:2x2x1
jax: 0.10.0
libtpu: 0.0.40
codegen_flags: <defaults>
</compile_context>

<pallas_src>
import jax
import jax.numpy as jnp
from jax.experimental import pallas as pl
from jax.experimental.pallas import tpu as pltpu


def _pointwise_conv_kernel(x_ref, w_ref, b_ref, o_ref):
    # x_ref: (Nb, Cin, T)   activations
    # w_ref: (Cout, Cin)    1x1 conv weight (kernel dims squeezed)
    # b_ref: (Cout, 1)      bias
    # o_ref: (Nb, Cout, T)  output
    cin = x_ref.shape[1]
    x = x_ref[...].astype(jnp.float32)
    w = w_ref[...].astype(jnp.float32)
    b = b_ref[...].astype(jnp.float32)

    if cin <= 16:
        # VPU broadcast-FMA, statically unrolled over the (small) Cin.
        # (Nb, 1, T) * (1, Cout, 1) -> (Nb, Cout, T): sublane-broadcast of the
        # input channel row against a lane-broadcast weight column.  Keeps the
        # MXU off the critical path of this purely memory-bound op.
        acc = x[:, 0:1, :] * w[:, 0:1][None]
        for c in range(1, cin):
            acc = acc + x[:, c:c + 1, :] * w[:, c:c + 1][None]
    else:
        # Fallback for wide 1x1 convs where the MXU is actually worth using.
        acc = jnp.einsum("bct,oc->bot", x, w, preferred_element_type=jnp.float32)

    o_ref[...] = (acc + b[None]).astype(o_ref.dtype)


# Spatial-lanes budget per grid step.  131072 lanes -> padded x tile 4 MiB +
# out tile 4 MiB, x2 double-buffering ~= 16 MiB of VMEM: amortizes the ~600
# cycle per-step overhead to <10% while fitting every generation's VMEM.
_MAX_STEP_LANES = 131072
# Keep at least this many grid steps (when the problem allows) so v7x's two
# TensorCores can both be fed via the "parallel" dimension semantics.
_MIN_PARALLEL_STEPS = 4
_VMEM_LIMIT_BYTES = 32 * 1024 * 1024


def _choose_tiles(n, hw, max_step_lanes):
    """Pick (batch-fold Nb, spatial tile T) for an (N, Cin, HW) activation."""
    if hw <= max_step_lanes:
        # Small/medium feature map: take the full spatial axis and fold batch
        # elements into each step so each step moves a worthwhile amount.
        t = hw
        nb = max(1, min(n, max_step_lanes // max(hw, 1)))
    else:
        # Large feature map: lane-dense, multiple-of-128 spatial tiles.
        t = max(128, (max_step_lanes // 128) * 128)
        nb = 1

    def n_steps(nb_, t_):
        return pl.cdiv(n, nb_) * pl.cdiv(hw, t_)

    # Ensure enough parallel grid steps for megacore / v7x 2-TC sharding.
    while nb > 1 and n_steps(nb, t) < _MIN_PARALLEL_STEPS:
        nb = max(1, nb // 2)
    while t > 128 and hw > t and n_steps(nb, t) < _MIN_PARALLEL_STEPS:
        t = max(128, ((t // 2) + 127) // 128 * 128)
    return nb, t


def pointwise_conv_pallas(x_ncl, weight, bias, *, max_step_lanes=_MAX_STEP_LANES):
    """1x1 conv (pointwise) on channel-major activations.

    x_ncl:  (N, Cin, L)                        activations (NCHW, spatial flattened)
    weight: (Cout, Cin) or (Cout, Cin, 1, 1)   PyTorch Conv2d weight
    bias:   (Cout,)
    returns (N, Cout, L)
    """
    n, cin, hw = x_ncl.shape
    if weight.ndim == 4:
        weight = weight.reshape(weight.shape[0], weight.shape[1])
    cout = weight.shape[0]
    bias2d = bias.reshape(cout, 1)

    nb, t = _choose_tiles(n, hw, max_step_lanes)
    grid = (pl.cdiv(n, nb), pl.cdiv(hw, t))

    return pl.pallas_call(
        _pointwise_conv_kernel,
        out_shape=jax.ShapeDtypeStruct((n, cout, hw), x_ncl.dtype),
        grid=grid,
        in_specs=[
            # Activations: Nb batch elements, full channel depth, one HW tile.
            pl.BlockSpec((nb, cin, t), lambda i, j: (i, 0, j)),
            # Weight / bias: constant index_map -> resident in VMEM all steps.
            pl.BlockSpec((cout, cin), lambda i, j: (0, 0)),
            pl.BlockSpec((cout, 1), lambda i, j: (0, 0)),
        ],
        out_specs=pl.BlockSpec((nb, cout, t), lambda i, j: (i, 0, j)),
        compiler_params=pltpu.CompilerParams(
            dimension_semantics=("parallel", "parallel"),
            vmem_limit_bytes=_VMEM_LIMIT_BYTES,
        ),
    )(x_ncl, weight, bias2d)


def return_feature_layer_forward(x, weight, bias, *, max_step_lanes=_MAX_STEP_LANES):
    """ReturnFeatureLayer(Conv2d(Cin, Cout, 1, bias=True)).forward(x) -> (mod(x), x).

    Accepts x as NCHW (N, Cin, H, W) or pre-flattened (N, Cin, L).  The second
    output is the input itself, untouched (no copy), as in the PyTorch module.
    For W < 128 prefer passing the flattened (N, Cin, H*W) form directly to
    avoid a possible HBM relayout around the kernel.
    """
    if x.ndim == 4:
        n, cin, h, w = x.shape
        out = pointwise_conv_pallas(x.reshape(n, cin, h * w), weight, bias,
                                    max_step_lanes=max_step_lanes)
        return out.reshape(n, out.shape[1], h, w), x
    out = pointwise_conv_pallas(x, weight, bias, max_step_lanes=max_step_lanes)
    return out, x


if __name__ == "__main__":
    key = jax.random.PRNGKey(0)
    kx, kw, kb, kx2, kx3 = jax.random.split(key, 5)

    # Shapes implied by the module: FBNet pointwise 1x1 conv, Cin=4 -> Cout=8.
    N, Cin, H, W = 2, 4, 16, 16
    Cout = 8

    x = jax.random.normal(kx, (N, Cin, H, W), dtype=jnp.float32)
    # PyTorch Conv2d weight layout (Cout, Cin, 1, 1).
    weight = jax.random.normal(kw, (Cout, Cin, 1, 1), dtype=jnp.float32) * 0.1
    bias = jax.random.normal(kb, (Cout,), dtype=jnp.float32) * 0.1

    out, feat = return_feature_layer_forward(x, weight, bias)
    jax.block_until_ready((out, feat))

    w2d = weight.reshape(Cout, Cin)
    ref = jnp.einsum("nchw,oc->nohw", x, w2d) + bias[None, :, None, None]
    assert out.shape == (N, Cout, H, W)
    assert feat.shape == x.shape
    assert jnp.allclose(out, ref, atol=1e-5, rtol=1e-5)
    assert jnp.array_equal(feat, x)

    # Extra coverage flagged by the review: ragged spatial tile (L not a
    # multiple of T) and ragged batch fold, forced via a tiny step budget.
    x2 = jax.random.normal(kx2, (3, Cin, 200), dtype=jnp.float32)   # ragged spatial
    out2, feat2 = return_feature_layer_forward(x2, weight, bias, max_step_lanes=128)
    ref2 = jnp.einsum("ncl,oc->nol", x2, w2d) + bias[None, :, None]
    assert jnp.allclose(out2, ref2, atol=1e-5, rtol=1e-5)
    assert jnp.array_equal(feat2, x2)

    x3 = jax.random.normal(kx3, (9, Cin, 64), dtype=jnp.float32)    # ragged batch fold
    out3, _ = return_feature_layer_forward(x3, weight, bias, max_step_lanes=256)
    ref3 = jnp.einsum("ncl,oc->nol", x3, w2d) + bias[None, :, None]
    assert jnp.allclose(out3, ref3, atol=1e-5, rtol=1e-5)

    jax.block_until_ready((out2, out3))
    print("KERNEL_OK")
</pallas_src>

<mosaic_0001>
module attributes {stable_mosaic.version = 11 : i64} {
  func.func @_pointwise_conv_kernel(%arg0: i32, %arg1: i32, %arg2: memref<1x4x256xf32, #tpu.memory_space<vmem>>, %arg3: memref<8x4xf32, #tpu.memory_space<vmem>>, %arg4: memref<8x1xf32, #tpu.memory_space<vmem>>, %arg5: memref<1x8x256xf32, #tpu.memory_space<vmem>>) attributes {dimension_semantics = [#tpu.dimension_semantics<parallel>, #tpu.dimension_semantics<parallel>], iteration_bounds = array<i64: 2, 1>, scalar_prefetch = 0 : i64, scratch_operands = 0 : i64, tpu.core_type = #tpu.core_type<tc>, window_params = [{transform_indices = @transform_0, window_bounds = array<i64: 1, 4, 256>}, {pipeline_mode = #tpu.pipeline_mode<synchronous>, transform_indices = @transform_1, window_bounds = array<i64: 8, 4>}, {pipeline_mode = #tpu.pipeline_mode<synchronous>, transform_indices = @transform_2, window_bounds = array<i64: 8, 1>}, {transform_indices = @transform_3, window_bounds = array<i64: 1, 8, 256>}]} {
    %c0 = arith.constant 0 : index
    %c0_0 = arith.constant 0 : index
    %c0_1 = arith.constant 0 : index
    %0 = vector.load %arg2[%c0, %c0_0, %c0_1] : memref<1x4x256xf32, #tpu.memory_space<vmem>>, vector<1x4x256xf32>
    %c0_2 = arith.constant 0 : index
    %c0_3 = arith.constant 0 : index
    %1 = vector.load %arg3[%c0_2, %c0_3] : memref<8x4xf32, #tpu.memory_space<vmem>>, vector<8x4xf32>
    %c0_4 = arith.constant 0 : index
    %c0_5 = arith.constant 0 : index
    %2 = vector.load %arg4[%c0_4, %c0_5] : memref<8x1xf32, #tpu.memory_space<vmem>>, vector<8x1xf32>
    %3 = vector.extract_strided_slice %0 {offsets = [0, 0, 0], sizes = [1, 1, 256], strides = [1, 1, 1]} : vector<1x4x256xf32> to vector<1x1x256xf32>
    %4 = vector.extract_strided_slice %1 {offsets = [0, 0], sizes = [8, 1], strides = [1, 1]} : vector<8x4xf32> to vector<8x1xf32>
    %5 = vector.shape_cast %4 : vector<8x1xf32> to vector<1x8x1xf32>
    %6 = vector.broadcast %3 : vector<1x1x256xf32> to vector<1x8x256xf32>
    %7 = vector.broadcast %5 : vector<1x8x1xf32> to vector<1x8x256xf32>
    %8 = arith.mulf %6, %7 : vector<1x8x256xf32>
    %9 = vector.extract_strided_slice %0 {offsets = [0, 1, 0], sizes = [1, 1, 256], strides = [1, 1, 1]} : vector<1x4x256xf32> to vector<1x1x256xf32>
    %10 = vector.extract_strided_slice %1 {offsets = [0, 1], sizes = [8, 1], strides = [1, 1]} : vector<8x4xf32> to vector<8x1xf32>
    %11 = vector.shape_cast %10 : vector<8x1xf32> to vector<1x8x1xf32>
    %12 = vector.broadcast %9 : vector<1x1x256xf32> to vector<1x8x256xf32>
    %13 = vector.broadcast %11 : vector<1x8x1xf32> to vector<1x8x256xf32>
    %14 = arith.mulf %12, %13 : vector<1x8x256xf32>
    %15 = arith.addf %8, %14 : vector<1x8x256xf32>
    %16 = vector.extract_strided_slice %0 {offsets = [0, 2, 0], sizes = [1, 1, 256], strides = [1, 1, 1]} : vector<1x4x256xf32> to vector<1x1x256xf32>
    %17 = vector.extract_strided_slice %1 {offsets = [0, 2], sizes = [8, 1], strides = [1, 1]} : vector<8x4xf32> to vector<8x1xf32>
    %18 = vector.shape_cast %17 : vector<8x1xf32> to vector<1x8x1xf32>
    %19 = vector.broadcast %16 : vector<1x1x256xf32> to vector<1x8x256xf32>
    %20 = vector.broadcast %18 : vector<1x8x1xf32> to vector<1x8x256xf32>
    %21 = arith.mulf %19, %20 : vector<1x8x256xf32>
    %22 = arith.addf %15, %21 : vector<1x8x256xf32>
    %23 = vector.extract_strided_slice %0 {offsets = [0, 3, 0], sizes = [1, 1, 256], strides = [1, 1, 1]} : vector<1x4x256xf32> to vector<1x1x256xf32>
    %24 = vector.extract_strided_slice %1 {offsets = [0, 3], sizes = [8, 1], strides = [1, 1]} : vector<8x4xf32> to vector<8x1xf32>
    %25 = vector.shape_cast %24 : vector<8x1xf32> to vector<1x8x1xf32>
    %26 = vector.broadcast %23 : vector<1x1x256xf32> to vector<1x8x256xf32>
    %27 = vector.broadcast %25 : vector<1x8x1xf32> to vector<1x8x256xf32>
    %28 = arith.mulf %26, %27 : vector<1x8x256xf32>
    %29 = arith.addf %22, %28 : vector<1x8x256xf32>
    %30 = vector.shape_cast %2 : vector<8x1xf32> to vector<1x8x1xf32>
    %31 = vector.broadcast %30 : vector<1x8x1xf32> to vector<1x8x256xf32>
    %32 = arith.addf %29, %31 : vector<1x8x256xf32>
    %c0_6 = arith.constant 0 : index
    %c0_7 = arith.constant 0 : index
    %c0_8 = arith.constant 0 : index
    %33 = vector.load %arg5[%c0_6, %c0_7, %c0_8] : memref<1x8x256xf32, #tpu.memory_space<vmem>>, vector<1x8x256xf32>
    tpu.vector_store %arg5[%c0_6, %c0_7, %c0_8], %32 {strides = array<i32>} : memref<1x8x256xf32, #tpu.memory_space<vmem>>, vector<1x8x256xf32>,
    return
  }
  func.func @transform_0(%arg0: i32, %arg1: i32) -> (i32, i32, i32) {
    %c0_i32 = arith.constant 0 : i32
    %c0_i32_0 = arith.constant 0 : i32
    return %arg0, %c0_i32, %arg1 : i32, i32, i32
  }
  func.func @transform_1(%arg0: i32, %arg1: i32) -> (i32, i32) {
    %c0_i32 = arith.constant 0 : i32
    %c0_i32_0 = arith.constant 0 : i32
    %c0_i32_1 = arith.constant 0 : i32
    return %c0_i32, %c0_i32_0 : i32, i32
  }
  func.func @transform_2(%arg0: i32, %arg1: i32) -> (i32, i32) {
    %c0_i32 = arith.constant 0 : i32
    %c0_i32_0 = arith.constant 0 : i32
    %c0_i32_1 = arith.constant 0 : i32
    return %c0_i32, %c0_i32_0 : i32, i32
  }
  func.func @transform_3(%arg0: i32, %arg1: i32) -> (i32, i32, i32) {
    %c0_i32 = arith.constant 0 : i32
    %c0_i32_0 = arith.constant 0 : i32
    return %arg0, %c0_i32, %arg1 : i32, i32, i32
  }
}

</mosaic_0001>

<llo_original>
// kernel: tpu_custom_call.1
$region0: #{tpu_custom_call.1}
  #allocation0 [shape = 'u32[]', space=smem, size = 0x4, offset = 0x4, fixed_abs, tag = 'smem constant byte address 0x4 - core index']
  #allocation1 [shape = 'u32[144,128]{1,0:T(1,128)}', space=vmem, size = 0x12000, scoped, tag = 'internal scratch']
  %s0 = inlined_call_operand.vmem [shape: f32[2,4,256], index: 0, kind: input, shape index: {}]
  %s1 = inlined_call_operand.vmem [shape: f32[8,4], index: 1, kind: input, shape index: {}]
  %s2 = inlined_call_operand.vmem [shape: f32[8,1], index: 2, kind: input, shape index: {}]
  %s3 = inlined_call_operand.hbm [shape: f32[2,8,256], index: 3, kind: output, shape index: {}]
  %s4 = sld [smem:[#allocation0]]
  $region45: #{tpu_custom_call.1} parent=0
    _
  %s6 = ssub.s32 1, %s4
  %s7 = scalar_select 0, %s6, %s4
  $region1: #{tpu_custom_call.1} parent=0
    #allocation2 [shape = 'u8[16384]{0}', space=vmem, size = 0x4000, scoped, tag = 'output window, operand 0']
    #allocation3 [shape = 's32[2]{0}', space=sflag, size = 0x8, scoped, tag = 'scoped memory for tpu_custom_call.1']
    %8 = vsyncpa [#allocation3], 0
    %s9 = scalar_lea.sflag [#allocation3], 1
    %10 = vsyncpa %s9, 0
    loop: start=0, step=1, limit=4
    $region2: #{tpu_custom_call.1} parent=1 // loop_pre_header
      _
    $region3: #{tpu_custom_call.1} parent=1 // loop_header
      %s12 = sphi 0, %s16
      %p13 = scmp.ge.s32.totalorder %s12, 4
      %s19 = sphi 0, %s31
      %s20 = sphi 0, %s27
      %s21 = sphi 0, %s19
      %s22 = sphi 0, %s20
      %s23 = sphi 0, %s21
      %s24 = sphi 0, %s22
      %s36 = sphi 0, %s38
      %s39 = sphi 0, %s36
      %s40 = sphi 0, %s39
      %s56 = sphi 0, %s40
      %s60 = sphi 0, %s60
      %s62 = sphi 0, %s60
      %s63 = sphi 0, %s62
      %s77 = sphi 0, %s63
      %s81 = sphi 0, %s81
      %s83 = sphi 0, %s81
      %s84 = sphi 0, %s83
      %s98 = sphi 0, %s84
      %s106 = sphi 0, %s108
      %s109 = sphi 0, %s106
      %s110 = sphi 0, %s109
      %s126 = sphi 0, %s110
    $region4: #{tpu_custom_call.1} parent=1 // loop_header_branch
      %15 = sbr.rel (%p13) target = $region8
    $region5: #{tpu_custom_call.1} parent=1 // loop_body
      %s17 = ssub.s32 %s12, 1
      %s18 = ssub.s32 %s12, 2
      %s25 = sadd.s32 1, %s20
      %p26 = scmp.ge.s32.totalorder %s25, 1
      %s27 = scalar_select %p26, 0, %s25
      %s28 = sadd.s32 1, %s19
      %s29 = scalar_select %p26, %s28, %s19
      %p30 = scmp.ge.s32.totalorder %s29, 2
      %s31 = scalar_select %p30, 0, %s29
      %s32 = ssub.s32 %s19, %s31
      %s33 = ssub.s32 %s20, %s27
      %s34 = sor.u32 %s32, %s33
      %p35 = scmp.eq.s32.totalorder %s34, 0
      %s37 = sadd.s32 %s36, 1
      %s38 = scalar_select %p35, %s36, %s37
      %p41 = pneg %p35
      %p42 = scmp.eq.s32.totalorder %s12, 1
      %p43 = por %p41, %p42
      %p44 = scmp.ne.s32.totalorder %s36, %s39
      %p45 = scmp.eq.s32.totalorder %s12, 0
      %p46 = por %p44, %p45
      %p47 = scmp.ne.s32.totalorder %s36, %s39
      %p48 = scmp.eq.s32.totalorder %s17, 1
      %p49 = por %p47, %p48
      %p50 = scmp.ne.s32.totalorder %s39, %s40
      %p51 = scmp.eq.s32.totalorder %s17, 0
      %p52 = por %p50, %p51
      %p53 = scmp.ne.s32.totalorder %s39, %s40
      %p54 = scmp.eq.s32.totalorder %s18, 1
      %p55 = por %p53, %p54
      %p57 = scmp.ne.s32.totalorder %s40, %s56
      %p58 = scmp.eq.s32.totalorder %s18, 0
      %p59 = por %p57, %p58
      %s61 = sadd.s32 %s60, 1
      %p64 = scmp.eq.s32.totalorder %s12, 1
      %p65 = scmp.ne.s32.totalorder %s60, %s62
      %p66 = scmp.eq.s32.totalorder %s12, 0
      %p67 = por %p65, %p66
      %p68 = scmp.ne.s32.totalorder %s60, %s62
      %p69 = scmp.eq.s32.totalorder %s17, 1
      %p70 = por %p68, %p69
      %p71 = scmp.ne.s32.totalorder %s62, %s63
      %p72 = scmp.eq.s32.totalorder %s17, 0
      %p73 = por %p71, %p72
      %p74 = scmp.ne.s32.totalorder %s62, %s63
      %p75 = scmp.eq.s32.totalorder %s18, 1
      %p76 = por %p74, %p75
      %p78 = scmp.ne.s32.totalorder %s63, %s77
      %p79 = scmp.eq.s32.totalorder %s18, 0
      %p80 = por %p78, %p79
      %s82 = sadd.s32 %s81, 1
      %p85 = scmp.eq.s32.totalorder %s12, 1
      %p86 = scmp.ne.s32.totalorder %s81, %s83
      %p87 = scmp.eq.s32.totalorder %s12, 0
      %p88 = por %p86, %p87
      %p89 = scmp.ne.s32.totalorder %s81, %s83
      %p90 = scmp.eq.s32.totalorder %s17, 1
      %p91 = por %p89, %p90
      %p92 = scmp.ne.s32.totalorder %s83, %s84
      %p93 = scmp.eq.s32.totalorder %s17, 0
      %p94 = por %p92, %p93
      %p95 = scmp.ne.s32.totalorder %s83, %s84
      %p96 = scmp.eq.s32.totalorder %s18, 1
      %p97 = por %p95, %p96
      %p99 = scmp.ne.s32.totalorder %s84, %s98
      %p100 = scmp.eq.s32.totalorder %s18, 0
      %p101 = por %p99, %p100
      %s102 = ssub.s32 %s19, %s31
      %s103 = ssub.s32 %s20, %s27
      %s104 = sor.u32 %s102, %s103
      %p105 = scmp.eq.s32.totalorder %s104, 0
      %s107 = sadd.s32 %s106, 1
      %s108 = scalar_select %p105, %s106, %s107
      %p111 = pneg %p105
      %p112 = scmp.eq.s32.totalorder %s12, 1
      %p113 = por %p111, %p112
      %p114 = scmp.ne.s32.totalorder %s106, %s109
      %p115 = scmp.eq.s32.totalorder %s12, 0
      %p116 = por %p114, %p115
      %p117 = scmp.ne.s32.totalorder %s106, %s109
      %p118 = scmp.eq.s32.totalorder %s17, 1
      %p119 = por %p117, %p118
      %p120 = scmp.ne.s32.totalorder %s109, %s110
      %p121 = scmp.eq.s32.totalorder %s17, 0
      %p122 = por %p120, %p121
      %p123 = scmp.ne.s32.totalorder %s109, %s110
      %p124 = scmp.eq.s32.totalorder %s18, 1
      %p125 = por %p123, %p124
      %p127 = scmp.ne.s32.totalorder %s110, %s126
      %p128 = scmp.eq.s32.totalorder %s18, 0
      %p129 = por %p127, %p128
      %p130 = scmp.le.s32.totalorder 1, %s12
      %p131 = scmp.lt.s32.totalorder %s12, 3
      %p132 = pnand %p130, %p131
      %p133 = pneg %p132
      // Predicated region
      $region9: #{tpu_custom_call.1} parent=5 // pred_check
        _
      $region10: #{tpu_custom_call.1} parent=5 // pred_check_branch
        %135 = sbr.rel (%p132) target = $region12
      $region11: #{tpu_custom_call.1} parent=5 // pred_region
        %s136 = ssub.s32 %s12, 1
        // Predicated region
        $region13: #{tpu_custom_call.1} parent=11 // pred_check
          %p137 = pneg %p73
        $region14: #{tpu_custom_call.1} parent=11 // pred_check_branch
          %139 = sbr.rel (%p137) target = $region16
        $region15: #{tpu_custom_call.1} parent=11 // pred_region
          _
        $region16: #{tpu_custom_call.1} parent=11 // pred_fallthru
          _
        // Predicated region
        $region17: #{tpu_custom_call.1} parent=11 // pred_check
          %p140 = pneg %p94
        $region18: #{tpu_custom_call.1} parent=11 // pred_check_branch
          %142 = sbr.rel (%p140) target = $region20
        $region19: #{tpu_custom_call.1} parent=11 // pred_region
          _
        $region20: #{tpu_custom_call.1} parent=11 // pred_fallthru
          _
      $region12: #{tpu_custom_call.1} parent=5 // pred_fallthru
        _
      %p143 = scmp.lt.s32.totalorder %s12, 2
      // Predicated region
      $region21: #{tpu_custom_call.1} parent=5 // pred_check
        %p144 = pneg %p143
      $region22: #{tpu_custom_call.1} parent=5 // pred_check_branch
        %146 = sbr.rel (%p144) target = $region24
      $region23: #{tpu_custom_call.1} parent=5 // pred_region
        // Predicated region
        $region25: #{tpu_custom_call.1} parent=23 // pred_check
          %p147 = pneg %p46
        $region26: #{tpu_custom_call.1} parent=23 // pred_check_branch
          %149 = sbr.rel (%p147) target = $region28
        $region27: #{tpu_custom_call.1} parent=23 // pred_region
          %s150 = smul.u32 2, %s20
          %p151 = scmp.lt.s32.totalorder %s19, 1
          %s152 = scalar_select %p151, %s19, 1
          %p153 = scmp.lt.s32.totalorder %s150, 1
          %s154 = scalar_select %p153, %s150, 1
          %s155 = smul.addr %s152, 2
          %s156 = sadd.s32 %s154, %s155
          %s157 = smul.addr %s156, 4
          %s158 = scalar_lea.vmem %s0, %s157
          %s159 = smul.u32 2, %s20
        $region28: #{tpu_custom_call.1} parent=23 // pred_fallthru
          _
      $region24: #{tpu_custom_call.1} parent=5 // pred_fallthru
        _
      %p160 = scmp.le.s32.totalorder 1, %s12
      %p161 = scmp.lt.s32.totalorder %s12, 3
      %p162 = pnand %p160, %p161
      %p163 = pneg %p162
      // Predicated region
      $region29: #{tpu_custom_call.1} parent=5 // pred_check
        _
      $region30: #{tpu_custom_call.1} parent=5 // pred_check_branch
        %165 = sbr.rel (%p162) target = $region32
      $region31: #{tpu_custom_call.1} parent=5 // pred_region
        %s166 = ssub.s32 %s12, 1
        %s167 = smul.u32 2, %s22
        %p168 = scmp.lt.s32.totalorder %s21, 1
        %s169 = scalar_select %p168, %s21, 1
        %p170 = scmp.lt.s32.totalorder %s167, 1
        %s171 = scalar_select %p170, %s167, 1
        %s172 = smul.addr %s169, 2
        %s173 = sadd.s32 %s171, %s172
        %s174 = smul.addr %s173, 4
        %s175 = scalar_lea.vmem %s0, %s174
        %p176 = pneg %p52
        %p177 = pneg %p49
        %p178 = pneg %p73
        %p179 = pneg %p70
        %p180 = pneg %p94
        %p181 = pneg %p91
        %p182 = pneg %p122
        %p183 = pneg %p119
        %s184 = sand.u32 %s109, 1
        %s185 = scalar_lea.sflag [#allocation3], %s184
        %s186 = sand.u32 %s109, 1
        %s187 = smul.addr %s186, 16
        %s188 = scalar_lea.vmem [#allocation2], %s187
        %s189 = smul.u32 2, %s22
        %p190 = scmp.lt.s32.totalorder %s21, 1
        %s191 = scalar_select %p190, %s21, 1
        %p192 = scmp.lt.s32.totalorder %s189, 1
        %s193 = scalar_select %p192, %s189, 1
        %s194 = smul.addr %s191, 2
        %s195 = sadd.s32 %s193, %s194
        %s196 = smul.addr %s195, 4
        %s197 = scalar_lea.vmem %s0, %s196
        %s198 = smul.u32 2, %s22
        %s199 = smul.u32 2, %s22
        %v200 = vld [vmem:[%s197] sm:$0xff]
        %v201 = vld [vmem:[%s1] sm:$0xff]
        %v202 = vld [vmem:[%s2] sm:$0xff]
        %v204 = vlaneseq
        %v205 = vshrl.u32 %v204, 7
        %v206 = vsub.s32 0, %v205
        %v207 = vrot.slane %v200, %v206
        %v208 = vlaneseq
        %v209 = vshrl.u32 %v208, 7
        %v210 = vsub.s32 4, %v209
        %v211 = vrot.slane %v200, %v210
        %v214 = vlaneseq
        %v215 = vshrl.u32 %v214, 7
        %v216 = vsub.s32 0, %v215
        %v217 = vrot.slane %v207, %v216
        %v218 = vlaneseq
        %v219 = vshrl.u32 %v218, 7
        %v220 = vsub.s32 0, %v219
        %v221 = vrot.slane %v211, %v220
        %223 = vset.pattern.permute.xlu0 0
        %224 = vperm.xlu0 %223, %v201
        %v225 = vpop.permute.xlu0 %224
        %v227 = vmul.f32 %v217, %v225
        %v228 = vmul.f32 %v221, %v225
        %v229 = vlaneseq
        %v230 = vshrl.u32 %v229, 7
        %v231 = vsub.s32 1, %v230
        %v232 = vrot.slane %v200, %v231
        %v233 = vlaneseq
        %v234 = vshrl.u32 %v233, 7
        %v235 = vsub.s32 5, %v234
        %v236 = vrot.slane %v200, %v235
        %v239 = vlaneseq
        %v240 = vshrl.u32 %v239, 7
        %v241 = vsub.s32 1, %v240
        %v242 = vrot.slane %v232, %v241
        %v243 = vlaneseq
        %v244 = vshrl.u32 %v243, 7
        %v245 = vsub.s32 1, %v244
        %v246 = vrot.slane %v236, %v245
        %247 = vset.pattern.permute.xlu0 1
        %248 = vperm.xlu0 %247, %v201
        %v249 = vpop.permute.xlu0 %248
        %v251 = vmul.f32 %v242, %v249
        %v252 = vmul.f32 %v246, %v249
        %v253 = vadd.f32 %v227, %v251
        %v254 = vadd.f32 %v228, %v252
        %v255 = vlaneseq
        %v256 = vshrl.u32 %v255, 7
        %v257 = vsub.s32 2, %v256
        %v258 = vrot.slane %v200, %v257
        %v259 = vlaneseq
        %v260 = vshrl.u32 %v259, 7
        %v261 = vsub.s32 6, %v260
        %v262 = vrot.slane %v200, %v261
        %v265 = vlaneseq
        %v266 = vshrl.u32 %v265, 7
        %v267 = vsub.s32 2, %v266
        %v268 = vrot.slane %v258, %v267
        %v269 = vlaneseq
        %v270 = vshrl.u32 %v269, 7
        %v271 = vsub.s32 2, %v270
        %v272 = vrot.slane %v262, %v271
        %273 = vset.pattern.permute.xlu0 2
        %274 = vperm.xlu0 %273, %v201
        %v275 = vpop.permute.xlu0 %274
        %v277 = vmul.f32 %v268, %v275
        %v278 = vmul.f32 %v272, %v275
        %v279 = vadd.f32 %v253, %v277
        %v280 = vadd.f32 %v254, %v278
        %v281 = vlaneseq
        %v282 = vshrl.u32 %v281, 7
        %v283 = vsub.s32 3, %v282
        %v284 = vrot.slane %v200, %v283
        %v285 = vlaneseq
        %v286 = vshrl.u32 %v285, 7
        %v287 = vsub.s32 7, %v286
        %v288 = vrot.slane %v200, %v287
        %v291 = vlaneseq
        %v292 = vshrl.u32 %v291, 7
        %v293 = vsub.s32 3, %v292
        %v294 = vrot.slane %v284, %v293
        %v295 = vlaneseq
        %v296 = vshrl.u32 %v295, 7
        %v297 = vsub.s32 3, %v296
        %v298 = vrot.slane %v288, %v297
        %299 = vset.pattern.permute.xlu0 3
        %300 = vperm.xlu0 %299, %v201
        %v301 = vpop.permute.xlu0 %300
        %v303 = vmul.f32 %v294, %v301
        %v304 = vmul.f32 %v298, %v301
        %v305 = vadd.f32 %v279, %v303
        %v306 = vadd.f32 %v280, %v304
        %308 = vset.pattern.permute.xlu0 0
        %309 = vperm.xlu0 %308, %v202
        %v310 = vpop.permute.xlu0 %309
        %v312 = vadd.f32 %v305, %v310
        %v313 = vadd.f32 %v306, %v310
        %314 = vst [vmem:[%s188] sm:$0xff] %v312
        %315 = vst [vmem:[%s188 + $0x8] sm:$0xff] %v313
        %s316 = sand.u32 %s109, 1
        %s317 = scalar_lea.sflag [#allocation3], %s316
        %s318 = sand.u32 %s109, 1
        %s319 = smul.addr %s318, 16
        %s320 = scalar_lea.vmem [#allocation2], %s319
        // Predicated region
        $region33: #{tpu_custom_call.1} parent=31 // pred_check
          %p321 = pneg %p119
        $region34: #{tpu_custom_call.1} parent=31 // pred_check_branch
          %323 = sbr.rel (%p321) target = $region36
        $region35: #{tpu_custom_call.1} parent=31 // pred_region
          %s324 = smul.u32 2, %s22
          %s326 = ssub.s32 256, 256
          %327 = vsyncadd %s317, %s326
          %s328 = smul.addr %s21, 2
          %s329 = sadd.s32 %s324, %s328
          %s330 = smul.addr %s329, 128
          %s331 = scalar_lea.hbm %s3, %s330
          %s333 = sshll.u32 %s320, 4
          %s334 = int_to_ptr.vmem [resolvable:$true] %s333
          %336 = dma.vmem_to_hbm [thread:$0]  %s334, 256, %s331, %s317
        $region36: #{tpu_custom_call.1} parent=31 // pred_fallthru
          _
      $region32: #{tpu_custom_call.1} parent=5 // pred_fallthru
        _
      %p337 = scmp.le.s32.totalorder 2, %s12
      // Predicated region
      $region37: #{tpu_custom_call.1} parent=5 // pred_check
        %p338 = pneg %p337
      $region38: #{tpu_custom_call.1} parent=5 // pred_check_branch
        %340 = sbr.rel (%p338) target = $region40
      $region39: #{tpu_custom_call.1} parent=5 // pred_region
        %s341 = ssub.s32 %s12, 2
        // Predicated region
        $region41: #{tpu_custom_call.1} parent=39 // pred_check
          %p342 = pneg %p125
        $region42: #{tpu_custom_call.1} parent=39 // pred_check_branch
          %344 = sbr.rel (%p342) target = $region44
        $region43: #{tpu_custom_call.1} parent=39 // pred_region
          %s345 = sand.u32 %s110, 1
          %s346 = scalar_lea.sflag [#allocation3], %s345
          %s347 = sand.u32 %s110, 1
          %s348 = smul.addr %s347, 16
          %s349 = scalar_lea.vmem [#allocation2], %s348
          %350 = dma.done %s346, 256
        $region44: #{tpu_custom_call.1} parent=39 // pred_fallthru
          _
      $region40: #{tpu_custom_call.1} parent=5 // pred_fallthru
        _
    $region6: #{tpu_custom_call.1} parent=1 // loop_footer
      %s16 = sadd.s32 1, %s12
    $region7: #{tpu_custom_call.1} parent=1 // loop_footer_branch
      %11 = sbr.rel target = $region3
    $region8: #{tpu_custom_call.1} parent=1 // loop_exit
      _
    %351 = vsyncpa [#allocation3], 1
    %s352 = scalar_lea.sflag [#allocation3], 1
    %353 = vsyncpa %s352, 1

</llo_original>
